<compile_context>
chip_gen: v7x
topology: tpu7x:2x2x1
jax: 0.10.0
libtpu: 0.0.40
codegen_flags: <defaults>
</compile_context>

<pallas_src>
import numpy as np
import jax
import jax.numpy as jnp
from jax import lax
from jax.experimental import pallas as pl
from jax.experimental.pallas import tpu as pltpu

ORDER = 3
NUM_COEFFS = ORDER ** 3

LANES = 128   # lane width of a vreg
SUB = 8       # sublane chunk: one f32 vreg slab (8, 128) per array


def _round_up(a, b):
    return ((a + b - 1) // b) * b


def fourier_surface_kernel(coeffs_ref, xyz_ref, out_ref):
    # coeffs_ref: (ORDER**3,) f32 in SMEM
    # xyz_ref:    (3, TM, 128) f32 in VMEM  (coordinate-major: x, y, z planes)
    # out_ref:    (TM, 128)    f32 in VMEM
    tm = out_ref.shape[0]
    two_pi = 2.0 * np.pi

    # Zero-cost static Ref-views per coordinate plane.
    x_ref = xyz_ref.at[0]
    y_ref = xyz_ref.at[1]
    z_ref = xyz_ref.at[2]

    def chunk(c, carry):
        r = pl.multiple_of(c * SUB, SUB)
        x = x_ref[pl.ds(r, SUB), :]
        y = y_ref[pl.ds(r, SUB), :]
        z = z_ref[pl.ds(r, SUB), :]

        if ORDER == 1:
            # Every term carries a sin(0) factor -> exactly zero.
            out_ref[pl.ds(r, SUB), :] = jnp.zeros_like(x)
            return carry

        # Only harmonics >= 1 contribute (sin(0*t) == 0): ORDER-1 sines per axis.
        sx = [jnp.sin((two_pi * i) * x) for i in range(1, ORDER)]
        sy = [jnp.sin((two_pi * j) * y) for j in range(1, ORDER)]
        sz = [jnp.sin((two_pi * k) * z) for k in range(1, ORDER)]

        # Factored reduction: acc = sum_i sx_i * (sum_j sy_j * (sum_k c_ijk * sz_k))
        acc = jnp.zeros_like(x)
        for i in range(1, ORDER):
            acc_j = jnp.zeros_like(x)
            for j in range(1, ORDER):
                base = i * ORDER * ORDER + j * ORDER
                inner = coeffs_ref[base + 1] * sz[0]
                for k in range(2, ORDER):
                    inner = inner + coeffs_ref[base + k] * sz[k - 1]
                acc_j = acc_j + sy[j - 1] * inner
            acc = acc + sx[i - 1] * acc_j

        out_ref[pl.ds(r, SUB), :] = acc
        return carry

    n_chunks = tm // SUB
    lax.fori_loop(0, n_chunks, chunk, 0, unroll=min(4, n_chunks))


def fourier_surface_cm(xyz_cm, coeffs, *, block_rows=512):
    """Coordinate-major fast path.

    xyz_cm: (3, rows, 128) f32 with rows a multiple of 8 (or of block_rows),
    returns (rows, 128) f32.
    """
    _, rows, lanes = xyz_cm.shape
    assert lanes == LANES
    tm = block_rows if rows >= block_rows else rows
    assert rows % tm == 0 and tm % SUB == 0

    return pl.pallas_call(
        fourier_surface_kernel,
        out_shape=jax.ShapeDtypeStruct((rows, LANES), jnp.float32),
        grid=(rows // tm,),
        in_specs=[
            pl.BlockSpec(memory_space=pltpu.MemorySpace.SMEM),      # coeffs (whole)
            pl.BlockSpec((3, tm, LANES), lambda g: (0, g, 0)),      # xyz tile
        ],
        out_specs=pl.BlockSpec((tm, LANES), lambda g: (g, 0)),
        compiler_params=pltpu.CompilerParams(
            dimension_semantics=("parallel",)),
    )(coeffs.astype(jnp.float32), xyz_cm)


def fourier_surface(xyz, coeffs, *, block_rows=512):
    """xyz: (N, 3) f32, coeffs: (ORDER**3,) f32 -> (N,) f32 (matches PyTorch)."""
    n = xyz.shape[0]
    rows = -(-n // LANES)  # cdiv
    tm = block_rows if rows >= block_rows else _round_up(rows, SUB)
    rows_p = _round_up(rows, tm)
    n_p = rows_p * LANES

    xyz_f32 = xyz.astype(jnp.float32)
    if n_p != n:
        xyz_f32 = jnp.pad(xyz_f32, ((0, n_p - n), (0, 0)))  # pad-and-trim tail
    # Coordinate-major, lane-dense layout: (3, rows_p, 128).
    xyz_cm = jnp.transpose(xyz_f32).reshape(3, rows_p, LANES)

    out = fourier_surface_cm(xyz_cm, coeffs, block_rows=tm)
    return out.reshape(n_p)[:n]


def fourier_surface_ref(xyz, coeffs):
    """Pure-JAX reference mirroring the PyTorch loop exactly (all ORDER**3 terms)."""
    x, y, z = xyz[:, 0], xyz[:, 1], xyz[:, 2]
    result = jnp.zeros_like(x)
    for i in range(ORDER):
        for j in range(ORDER):
            for k in range(ORDER):
                idx = i * ORDER ** 2 + j * ORDER + k
                result = result + coeffs[idx] * (
                    jnp.sin(2 * np.pi * i * x)
                    * jnp.sin(2 * np.pi * j * y)
                    * jnp.sin(2 * np.pi * k * z)
                )
    return result


if __name__ == "__main__":
    key = jax.random.PRNGKey(0)
    k_coeffs, k_xyz1, k_xyz2 = jax.random.split(key, 3)

    # Deterministic parameter init (module: randn(order**3) * 0.1)
    coeffs = jax.random.normal(k_coeffs, (NUM_COEFFS,), dtype=jnp.float32) * 0.1

    # Case 1: small N, exercises the pad-and-trim tail path (512 -> 1024 padded).
    n1 = 512
    xyz1 = jax.random.normal(k_xyz1, (n1, 3), dtype=jnp.float32)
    out1 = jax.block_until_ready(fourier_surface(xyz1, coeffs))
    ref1 = fourier_surface_ref(xyz1, coeffs)
    assert out1.shape == (n1,)
    np.testing.assert_allclose(np.asarray(out1), np.asarray(ref1),
                               rtol=1e-4, atol=1e-5)

    # Case 2: non-multiple N with a multi-step grid (small block_rows for coverage).
    n2 = 3000
    xyz2 = jax.random.normal(k_xyz2, (n2, 3), dtype=jnp.float32)
    out2 = jax.block_until_ready(fourier_surface(xyz2, coeffs, block_rows=8))
    ref2 = fourier_surface_ref(xyz2, coeffs)
    assert out2.shape == (n2,)
    np.testing.assert_allclose(np.asarray(out2), np.asarray(ref2),
                               rtol=1e-4, atol=1e-5)

    print("KERNEL_OK")
</pallas_src>

<mosaic_0001>
module attributes {stable_mosaic.version = 11 : i64} {
  func.func @fourier_surface_kernel(%arg0: i32, %arg1: memref<27xf32, #tpu.memory_space<smem>>, %arg2: memref<3x8x128xf32, #tpu.memory_space<vmem>>, %arg3: memref<8x128xf32, #tpu.memory_space<vmem>>) attributes {dimension_semantics = [#tpu.dimension_semantics<parallel>], iteration_bounds = array<i64: 1>, scalar_prefetch = 0 : i64, scratch_operands = 0 : i64, tpu.core_type = #tpu.core_type<tc>, window_params = [{transform_indices = @transform_0, window_bounds = array<i64: 27>}, {transform_indices = @transform_1, window_bounds = array<i64: 3, 8, 128>}, {transform_indices = @transform_2, window_bounds = array<i64: 8, 128>}]} {
    %c0_i32 = arith.constant 0 : i32
    %c1_i32 = arith.constant 1 : i32
    %c2_i32 = arith.constant 2 : i32
    %c0_i32_0 = arith.constant 0 : i32
    %c8_i32 = arith.constant 8 : i32
    %0 = arith.muli %c0_i32_0, %c8_i32 : i32
    %1 = tpu.assume_multiple %0, 8 : i32
    %c0_i32_1 = arith.constant 0 : i32
    %c0_i32_2 = arith.constant 0 : i32
    %2 = tpu.memref_slice %arg2[%c0_i32, %c0_i32_1, %c0_i32_2] : memref<3x8x128xf32, #tpu.memory_space<vmem>> -> memref<1x8x128xf32, #tpu.memory_space<vmem>>
    %3 = tpu.memref_squeeze %2 : memref<1x8x128xf32, #tpu.memory_space<vmem>> -> memref<8x128xf32, #tpu.memory_space<vmem>>
    %4 = arith.index_cast %1 : i32 to index
    %c0 = arith.constant 0 : index
    %5 = vector.load %3[%4, %c0] : memref<8x128xf32, #tpu.memory_space<vmem>>, vector<8x128xf32>
    %c0_i32_3 = arith.constant 0 : i32
    %c0_i32_4 = arith.constant 0 : i32
    %6 = tpu.memref_slice %arg2[%c1_i32, %c0_i32_3, %c0_i32_4] : memref<3x8x128xf32, #tpu.memory_space<vmem>> -> memref<1x8x128xf32, #tpu.memory_space<vmem>>
    %7 = tpu.memref_squeeze %6 : memref<1x8x128xf32, #tpu.memory_space<vmem>> -> memref<8x128xf32, #tpu.memory_space<vmem>>
    %8 = arith.index_cast %1 : i32 to index
    %c0_5 = arith.constant 0 : index
    %9 = vector.load %7[%8, %c0_5] : memref<8x128xf32, #tpu.memory_space<vmem>>, vector<8x128xf32>
    %c0_i32_6 = arith.constant 0 : i32
    %c0_i32_7 = arith.constant 0 : i32
    %10 = tpu.memref_slice %arg2[%c2_i32, %c0_i32_6, %c0_i32_7] : memref<3x8x128xf32, #tpu.memory_space<vmem>> -> memref<1x8x128xf32, #tpu.memory_space<vmem>>
    %11 = tpu.memref_squeeze %10 : memref<1x8x128xf32, #tpu.memory_space<vmem>> -> memref<8x128xf32, #tpu.memory_space<vmem>>
    %12 = arith.index_cast %1 : i32 to index
    %c0_8 = arith.constant 0 : index
    %13 = vector.load %11[%12, %c0_8] : memref<8x128xf32, #tpu.memory_space<vmem>>, vector<8x128xf32>
    %cst = arith.constant 6.28318548 : f32
    %14 = vector.broadcast %cst : f32 to vector<8x128xf32>
    %15 = arith.mulf %14, %5 : vector<8x128xf32>
    %16 = math.sin %15 : vector<8x128xf32>
    %cst_9 = arith.constant 12.566371 : f32
    %17 = vector.broadcast %cst_9 : f32 to vector<8x128xf32>
    %18 = arith.mulf %17, %5 : vector<8x128xf32>
    %19 = math.sin %18 : vector<8x128xf32>
    %cst_10 = arith.constant 6.28318548 : f32
    %20 = vector.broadcast %cst_10 : f32 to vector<8x128xf32>
    %21 = arith.mulf %20, %9 : vector<8x128xf32>
    %22 = math.sin %21 : vector<8x128xf32>
    %cst_11 = arith.constant 12.566371 : f32
    %23 = vector.broadcast %cst_11 : f32 to vector<8x128xf32>
    %24 = arith.mulf %23, %9 : vector<8x128xf32>
    %25 = math.sin %24 : vector<8x128xf32>
    %cst_12 = arith.constant 6.28318548 : f32
    %26 = vector.broadcast %cst_12 : f32 to vector<8x128xf32>
    %27 = arith.mulf %26, %13 : vector<8x128xf32>
    %28 = math.sin %27 : vector<8x128xf32>
    %cst_13 = arith.constant 12.566371 : f32
    %29 = vector.broadcast %cst_13 : f32 to vector<8x128xf32>
    %30 = arith.mulf %29, %13 : vector<8x128xf32>
    %31 = math.sin %30 : vector<8x128xf32>
    %cst_14 = arith.constant 0.000000e+00 : f32
    %32 = vector.broadcast %cst_14 : f32 to vector<8x128xf32>
    %cst_15 = arith.constant 0.000000e+00 : f32
    %33 = vector.broadcast %cst_15 : f32 to vector<8x128xf32>
    %c13 = arith.constant 13 : index
    %34 = memref.load %arg1[%c13] : memref<27xf32, #tpu.memory_space<smem>>
    %35 = vector.broadcast %34 : f32 to vector<8x128xf32>
    %36 = arith.mulf %35, %28 : vector<8x128xf32>
    %c14 = arith.constant 14 : index
    %37 = memref.load %arg1[%c14] : memref<27xf32, #tpu.memory_space<smem>>
    %38 = vector.broadcast %37 : f32 to vector<8x128xf32>
    %39 = arith.mulf %38, %31 : vector<8x128xf32>
    %40 = arith.addf %36, %39 : vector<8x128xf32>
    %41 = arith.mulf %22, %40 : vector<8x128xf32>
    %42 = arith.addf %33, %41 : vector<8x128xf32>
    %c16 = arith.constant 16 : index
    %43 = memref.load %arg1[%c16] : memref<27xf32, #tpu.memory_space<smem>>
    %44 = vector.broadcast %43 : f32 to vector<8x128xf32>
    %45 = arith.mulf %44, %28 : vector<8x128xf32>
    %c17 = arith.constant 17 : index
    %46 = memref.load %arg1[%c17] : memref<27xf32, #tpu.memory_space<smem>>
    %47 = vector.broadcast %46 : f32 to vector<8x128xf32>
    %48 = arith.mulf %47, %31 : vector<8x128xf32>
    %49 = arith.addf %45, %48 : vector<8x128xf32>
    %50 = arith.mulf %25, %49 : vector<8x128xf32>
    %51 = arith.addf %42, %50 : vector<8x128xf32>
    %52 = arith.mulf %16, %51 : vector<8x128xf32>
    %53 = arith.addf %32, %52 : vector<8x128xf32>
    %cst_16 = arith.constant 0.000000e+00 : f32
    %54 = vector.broadcast %cst_16 : f32 to vector<8x128xf32>
    %c22 = arith.constant 22 : index
    %55 = memref.load %arg1[%c22] : memref<27xf32, #tpu.memory_space<smem>>
    %56 = vector.broadcast %55 : f32 to vector<8x128xf32>
    %57 = arith.mulf %56, %28 : vector<8x128xf32>
    %c23 = arith.constant 23 : index
    %58 = memref.load %arg1[%c23] : memref<27xf32, #tpu.memory_space<smem>>
    %59 = vector.broadcast %58 : f32 to vector<8x128xf32>
    %60 = arith.mulf %59, %31 : vector<8x128xf32>
    %61 = arith.addf %57, %60 : vector<8x128xf32>
    %62 = arith.mulf %22, %61 : vector<8x128xf32>
    %63 = arith.addf %54, %62 : vector<8x128xf32>
    %c25 = arith.constant 25 : index
    %64 = memref.load %arg1[%c25] : memref<27xf32, #tpu.memory_space<smem>>
    %65 = vector.broadcast %64 : f32 to vector<8x128xf32>
    %66 = arith.mulf %65, %28 : vector<8x128xf32>
    %c26 = arith.constant 26 : index
    %67 = memref.load %arg1[%c26] : memref<27xf32, #tpu.memory_space<smem>>
    %68 = vector.broadcast %67 : f32 to vector<8x128xf32>
    %69 = arith.mulf %68, %31 : vector<8x128xf32>
    %70 = arith.addf %66, %69 : vector<8x128xf32>
    %71 = arith.mulf %25, %70 : vector<8x128xf32>
    %72 = arith.addf %63, %71 : vector<8x128xf32>
    %73 = arith.mulf %19, %72 : vector<8x128xf32>
    %74 = arith.addf %53, %73 : vector<8x128xf32>
    %75 = arith.index_cast %1 : i32 to index
    %c0_17 = arith.constant 0 : index
    %76 = vector.load %arg3[%75, %c0_17] : memref<8x128xf32, #tpu.memory_space<vmem>>, vector<8x128xf32>
    tpu.vector_store %arg3[%75, %c0_17], %74 {strides = array<i32>} : memref<8x128xf32, #tpu.memory_space<vmem>>, vector<8x128xf32>,
    %c1_i32_18 = arith.constant 1 : i32
    return
  }
  func.func @transform_0(%arg0: i32) -> i32 {
    %c0_i32 = arith.constant 0 : i32
    %c0_i32_0 = arith.constant 0 : i32
    return %c0_i32 : i32
  }
  func.func @transform_1(%arg0: i32) -> (i32, i32, i32) {
    %c0_i32 = arith.constant 0 : i32
    %c0_i32_0 = arith.constant 0 : i32
    %c0_i32_1 = arith.constant 0 : i32
    return %c0_i32, %arg0, %c0_i32_0 : i32, i32, i32
  }
  func.func @transform_2(%arg0: i32) -> (i32, i32) {
    %c0_i32 = arith.constant 0 : i32
    %c0_i32_0 = arith.constant 0 : i32
    return %arg0, %c0_i32 : i32, i32
  }
}

</mosaic_0001>

<llo_original>
// kernel: tpu_custom_call.1
$region0: #{tpu_custom_call.1}
  #allocation0 [shape = 'u32[]', space=smem, size = 0x4, offset = 0x4, fixed_abs, tag = 'smem constant byte address 0x4 - core index']
  #allocation1 [shape = 'u32[144,128]{1,0:T(1,128)}', space=vmem, size = 0x12000, scoped, tag = 'internal scratch']
  %s0 = inlined_call_operand.hbm [shape: f32[27], index: 0, kind: input, shape index: {}]
  %s1 = inlined_call_operand.hbm [shape: f32[3,8,128], index: 1, kind: input, shape index: {}]
  %s2 = inlined_call_operand.hbm [shape: f32[8,128], index: 2, kind: output, shape index: {}]
  %s3 = sld [smem:[#allocation0]]
  $region26: #{tpu_custom_call.1} parent=0
    _
  %s5 = ssub.s32 1, %s3
  %s6 = scalar_select 0, %s5, %s3
  $region1: #{tpu_custom_call.1} parent=0
    #allocation2 [shape = 'u8[512]{0}', space=smem, size = 0x200, scoped, tag = 'input window, operand 0, single buffered']
    #allocation3 [shape = 's32[1]{0}', space=sflag, size = 0x4, scoped, tag = 'scoped memory for tpu_custom_call.1']
    #allocation4 [shape = 's32[1]{0}', space=sflag, size = 0x4, scoped, tag = 'scoped memory for tpu_custom_call.1']
    #allocation5 [shape = 's32[1]{0}', space=sflag, size = 0x4, scoped, tag = 'scoped memory for tpu_custom_call.1']
    #allocation6 [shape = 'u8[12288]{0}', space=vmem, size = 0x3000, scoped, tag = 'input window, operand 1, single buffered']
    #allocation7 [shape = 'u8[4096]{0}', space=vmem, size = 0x1000, scoped, tag = 'output window, operand 0, single buffered']
    %7 = vsyncpa [#allocation5], 0
    %8 = vsyncpa [#allocation3], 0
    %9 = vsyncpa [#allocation4], 0
    // Predicated region
    $region2: #{tpu_custom_call.1} parent=1 // pred_check
      _
    $region3: #{tpu_custom_call.1} parent=1 // pred_check_branch
      %11 = sbr.rel (0) target = $region5
    $region4: #{tpu_custom_call.1} parent=1 // pred_region
      %s13 = ssub.s32 16, 16
      %14 = vsyncadd [#allocation5], %s13
      %17 = dma.hbm_to_smem %s0, 16, [#allocation2], [#allocation5]
    $region5: #{tpu_custom_call.1} parent=1 // pred_fallthru
      _
    // Predicated region
    $region6: #{tpu_custom_call.1} parent=1 // pred_check
      _
    $region7: #{tpu_custom_call.1} parent=1 // pred_check_branch
      %19 = sbr.rel (0) target = $region9
    $region8: #{tpu_custom_call.1} parent=1 // pred_region
      %s21 = ssub.s32 384, 384
      %22 = vsyncadd [#allocation3], %s21
      %s23 = sshll.u32 [#allocation6], 4
      %s24 = int_to_ptr.vmem [resolvable:$true] %s23
      %29 = dma.hbm_to_vmem [thread:$0]  %s1, 384, %s24, [#allocation3], 128, 128, 8
    $region9: #{tpu_custom_call.1} parent=1 // pred_fallthru
      _
    // Predicated region
    $region10: #{tpu_custom_call.1} parent=1 // pred_check
      _
    $region11: #{tpu_custom_call.1} parent=1 // pred_check_branch
      %31 = sbr.rel (0) target = $region13
    $region12: #{tpu_custom_call.1} parent=1 // pred_region
      %32 = dma.done [#allocation5], 16
    $region13: #{tpu_custom_call.1} parent=1 // pred_fallthru
      _
    // Predicated region
    $region14: #{tpu_custom_call.1} parent=1 // pred_check
      _
    $region15: #{tpu_custom_call.1} parent=1 // pred_check_branch
      %34 = sbr.rel (0) target = $region17
    $region16: #{tpu_custom_call.1} parent=1 // pred_region
      %35 = dma.done [#allocation3], 384
    $region17: #{tpu_custom_call.1} parent=1 // pred_fallthru
      _
    %36 = sfence
    %v37 = vld [vmem:[#allocation6] sm:$0xff]
    %s38 = scalar_lea.vmem [#allocation6], 8
    %v39 = vld [vmem:[%s38] sm:$0xff]
    %s40 = scalar_lea.vmem [#allocation6], 16
    %v41 = vld [vmem:[%s40] sm:$0xff]
    %v42 = vmul.f32 %v37, 6.2831855
    %v43 = vand.u32 2147483647, %v42
    %vm44 = vcmp.le.f32.partialorder %v43, 0.7853982
    %vm45 = vcmp.lt.s32.totalorder %v42, 0
    %v46 = vand.u32 %v42, 2139095040
    %v47 = vshrl.u32 %v46, 23
    %v48 = vsub.s32 %v47, 127
    %v49 = vand.u32 2147483647, %v42
    %v50 = vand.u32 %v49, 8388607
    %v51 = vor.u32 %v50, 8388608
    %v52 = vsub.s32 0, %v51
    %v53 = vadd.s32 %v48, 1
    %vm54 = vcmp.gt.s32.totalorder %v53, 0
    %v55 = vsel %vm54, %v53, 0
    %v56 = vshrl.u32 %v55, 5
    %v57 = vand.u32 %v55, 31
    %v58 = vsub.s32 32, %v57
    %v59 = vshrl.u32 683565275, %v58
    %v60 = vshll.u32 683565275, %v57
    %v61 = vshrl.u32 2475754826, %v58
    %v62 = vor.u32 %v60, %v61
    %v63 = vshll.u32 2475754826, %v57
    %v64 = vshrl.u32 2131351028, %v58
    %v65 = vor.u32 %v63, %v64
    %v66 = vshll.u32 2131351028, %v57
    %v67 = vshrl.u32 2102212464, %v58
    %v68 = vor.u32 %v66, %v67
    %v69 = vshll.u32 2102212464, %v57
    %v70 = vshrl.u32 920167782, %v58
    %v71 = vor.u32 %v69, %v70
    %v72 = vshll.u32 920167782, %v57
    %v73 = vshrl.u32 1326507024, %v58
    %v74 = vor.u32 %v72, %v73
    %vm75 = vcmp.lt.s32.totalorder %v56, 1
    %vm76 = vcmp.lt.s32.totalorder %v56, 2
    %vm77 = vcmp.lt.s32.totalorder %v56, 3
    %vm78 = vcmp.lt.s32.totalorder %v56, 4
    %v79 = vsel %vm75, %v59, %v62
    %v80 = vsel %vm78, %v68, 2102212464
    %v81 = vsel %vm77, %v65, %v80
    %v82 = vsel %vm76, %v79, %v81
    %v83 = vsel %vm75, %v62, %v65
    %v84 = vsel %vm78, %v71, 920167782
    %v85 = vsel %vm77, %v68, %v84
    %v86 = vsel %vm76, %v83, %v85
    %v87 = vsel %vm75, %v65, %v68
    %v88 = vsel %vm78, %v74, 1326507024
    %v89 = vsel %vm77, %v71, %v88
    %v90 = vsel %vm76, %v87, %v89
    %v91 = vshll.u32 %v51, 8
    %v92 = vmul.u32.u64.compose %v91, %v90
    %v93 = vextract.low.u32 %v92
    %v94 = vextract.high.u32 %v92
    %v95 = vmul.u32.u64.compose %v91, %v86
    %v96 = vextract.low.u32 %v95
    %v97 = vextract.high.u32 %v95
    %v98 = vmul.u32 %v91, %v82
    %v99 = vadd.s32 %v94, %v96
    %vm100 = vc.u32 %v94, %v96
    %v101 = vadd.s32 %v97, 1
    %v102 = vsel %vm100, %v101, %v97
    %v103 = vadd.s32 %v98, %v102
    %v104 = vadd.s32 %v103, 536870912
    %v105 = vshrl.u32 %v104, 30
    %v106 = vshll.u32 %v105, 30
    %v107 = vsub.s32 %v103, %v106
    %vm108 = vcmp.lt.s32.totalorder %v107, 0
    %v109 = vsub.s32 0, %v107
    %v110 = vsel %vm108, %v109, %v107
    %v111 = vclz %v110
    %v112 = vsub.s32 %v111, 2
    %vm113 = vcmp.gt.s32.totalorder 0, %v112
    %v114 = vsel %vm113, 0, %v112
    %v115 = vsub.s32 32, %v114
    %v116 = vshll.u32 %v107, %v114
    %v117 = vshrl.u32 %v99, %v115
    %v118 = vor.u32 %v116, %v117
    %v119 = vsub.s32 4294967266, %v114
    %v120 = vadd.s32 %v119, 127
    %v121 = vshll.u32 %v120, 23
    %v122 = vor.u32 4788187, %v121
    %v123 = vand.u32 2147483647, %v122
    %v125 = vcvt.s32.f32 %v118
    %v126 = vmul.f32 %v125, %v123
    %v127 = vxor.u32 %v126, 2147483648
    %v128 = vsel %vm45, %v127, %v126
    %v129 = vsub.s32 4, %v105
    %v130 = vsel %vm45, %v129, %v105
    %v131 = vsel %vm44, %v42, %v128
    %v132 = vsel %vm44, 0, %v130
    %v133 = vcosq.f32.pop %v131
    %v134 = vsinq.f32.pop %v131
    %vm135 = vweird.f32 %v42
    %v136 = vadd.s32 %v132, 3
    %v137 = vand.u32 %v136, 3
    %vm138 = vcmp.lt.s32.totalorder %v137, 2
    %vm139 = vcmp.eq.s32.totalorder %v137, 0
    %v140 = vxor.u32 %v134, 2147483648
    %v141 = vsel %vm139, %v133, %v140
    %vm142 = vcmp.eq.s32.totalorder %v137, 2
    %v143 = vxor.u32 %v133, 2147483648
    %v144 = vsel %vm142, %v143, %v134
    %v145 = vsel %vm138, %v141, %v144
    %v146 = vsel %vm135, nan, %v145
    %v147 = vmul.f32 %v37, 12.566371
    %v148 = vand.u32 2147483647, %v147
    %vm149 = vcmp.le.f32.partialorder %v148, 0.7853982
    %vm150 = vcmp.lt.s32.totalorder %v147, 0
    %v151 = vand.u32 %v147, 2139095040
    %v152 = vshrl.u32 %v151, 23
    %v153 = vsub.s32 %v152, 127
    %v154 = vand.u32 2147483647, %v147
    %v155 = vand.u32 %v154, 8388607
    %v156 = vor.u32 %v155, 8388608
    %v157 = vsub.s32 0, %v156
    %v158 = vadd.s32 %v153, 1
    %vm159 = vcmp.gt.s32.totalorder %v158, 0
    %v160 = vsel %vm159, %v158, 0
    %v161 = vshrl.u32 %v160, 5
    %v162 = vand.u32 %v160, 31
    %v163 = vsub.s32 32, %v162
    %v164 = vshrl.u32 683565275, %v163
    %v165 = vshll.u32 683565275, %v162
    %v166 = vshrl.u32 2475754826, %v163
    %v167 = vor.u32 %v165, %v166
    %v168 = vshll.u32 2475754826, %v162
    %v169 = vshrl.u32 2131351028, %v163
    %v170 = vor.u32 %v168, %v169
    %v171 = vshll.u32 2131351028, %v162
    %v172 = vshrl.u32 2102212464, %v163
    %v173 = vor.u32 %v171, %v172
    %v174 = vshll.u32 2102212464, %v162
    %v175 = vshrl.u32 920167782, %v163
    %v176 = vor.u32 %v174, %v175
    %v177 = vshll.u32 920167782, %v162
    %v178 = vshrl.u32 1326507024, %v163
    %v179 = vor.u32 %v177, %v178
    %vm180 = vcmp.lt.s32.totalorder %v161, 1
    %vm181 = vcmp.lt.s32.totalorder %v161, 2
    %vm182 = vcmp.lt.s32.totalorder %v161, 3
    %vm183 = vcmp.lt.s32.totalorder %v161, 4
    %v184 = vsel %vm180, %v164, %v167
    %v185 = vsel %vm183, %v173, 2102212464
    %v186 = vsel %vm182, %v170, %v185
    %v187 = vsel %vm181, %v184, %v186
    %v188 = vsel %vm180, %v167, %v170
    %v189 = vsel %vm183, %v176, 920167782
    %v190 = vsel %vm182, %v173, %v189
    %v191 = vsel %vm181, %v188, %v190
    %v192 = vsel %vm180, %v170, %v173
    %v193 = vsel %vm183, %v179, 1326507024
    %v194 = vsel %vm182, %v176, %v193
    %v195 = vsel %vm181, %v192, %v194
    %v196 = vshll.u32 %v156, 8
    %v197 = vmul.u32.u64.compose %v196, %v195
    %v198 = vextract.low.u32 %v197
    %v199 = vextract.high.u32 %v197
    %v200 = vmul.u32.u64.compose %v196, %v191
    %v201 = vextract.low.u32 %v200
    %v202 = vextract.high.u32 %v200
    %v203 = vmul.u32 %v196, %v187
    %v204 = vadd.s32 %v199, %v201
    %vm205 = vc.u32 %v199, %v201
    %v206 = vadd.s32 %v202, 1
    %v207 = vsel %vm205, %v206, %v202
    %v208 = vadd.s32 %v203, %v207
    %v209 = vadd.s32 %v208, 536870912
    %v210 = vshrl.u32 %v209, 30
    %v211 = vshll.u32 %v210, 30
    %v212 = vsub.s32 %v208, %v211
    %vm213 = vcmp.lt.s32.totalorder %v212, 0
    %v214 = vsub.s32 0, %v212
    %v215 = vsel %vm213, %v214, %v212
    %v216 = vclz %v215
    %v217 = vsub.s32 %v216, 2
    %vm218 = vcmp.gt.s32.totalorder 0, %v217
    %v219 = vsel %vm218, 0, %v217
    %v220 = vsub.s32 32, %v219
    %v221 = vshll.u32 %v212, %v219
    %v222 = vshrl.u32 %v204, %v220
    %v223 = vor.u32 %v221, %v222
    %v224 = vsub.s32 4294967266, %v219
    %v225 = vadd.s32 %v224, 127
    %v226 = vshll.u32 %v225, 23
    %v227 = vor.u32 4788187, %v226
    %v228 = vand.u32 2147483647, %v227
    %v230 = vcvt.s32.f32 %v223
    %v231 = vmul.f32 %v230, %v228
    %v232 = vxor.u32 %v231, 2147483648
    %v233 = vsel %vm150, %v232, %v231
    %v234 = vsub.s32 4, %v210
    %v235 = vsel %vm150, %v234, %v210
    %v236 = vsel %vm149, %v147, %v233
    %v237 = vsel %vm149, 0, %v235
    %v238 = vcosq.f32.pop %v236
    %v239 = vsinq.f32.pop %v236
    %vm240 = vweird.f32 %v147
    %v241 = vadd.s32 %v237, 3
    %v242 = vand.u32 %v241, 3
    %vm243 = vcmp.lt.s32.totalorder %v242, 2
    %vm244 = vcmp.eq.s32.totalorder %v242, 0
    %v245 = vxor.u32 %v239, 2147483648
    %v246 = vsel %vm244, %v238, %v245
    %vm247 = vcmp.eq.s32.totalorder %v242, 2
    %v248 = vxor.u32 %v238, 2147483648
    %v249 = vsel %vm247, %v248, %v239
    %v250 = vsel %vm243, %v246, %v249
    %v251 = vsel %vm240, nan, %v250
    %v252 = vmul.f32 %v39, 6.2831855
    %v253 = vand.u32 2147483647, %v252
    %vm254 = vcmp.le.f32.partialorder %v253, 0.7853982
    %vm255 = vcmp.lt.s32.totalorder %v252, 0
    %v256 = vand.u32 %v252, 2139095040
    %v257 = vshrl.u32 %v256, 23
    %v258 = vsub.s32 %v257, 127
    %v259 = vand.u32 2147483647, %v252
    %v260 = vand.u32 %v259, 8388607
    %v261 = vor.u32 %v260, 8388608
    %v262 = vsub.s32 0, %v261
    %v263 = vadd.s32 %v258, 1
    %vm264 = vcmp.gt.s32.totalorder %v263, 0
    %v265 = vsel %vm264, %v263, 0
    %v266 = vshrl.u32 %v265, 5
    %v267 = vand.u32 %v265, 31
    %v268 = vsub.s32 32, %v267
    %v269 = vshrl.u32 683565275, %v268
    %v270 = vshll.u32 683565275, %v267
    %v271 = vshrl.u32 2475754826, %v268
    %v272 = vor.u32 %v270, %v271
    %v273 = vshll.u32 2475754826, %v267
    %v274 = vshrl.u32 2131351028, %v268
    %v275 = vor.u32 %v273, %v274
    %v276 = vshll.u32 2131351028, %v267
    %v277 = vshrl.u32 2102212464, %v268
    %v278 = vor.u32 %v276, %v277
    %v279 = vshll.u32 2102212464, %v267
    %v280 = vshrl.u32 920167782, %v268
    %v281 = vor.u32 %v279, %v280
    %v282 = vshll.u32 920167782, %v267
    %v283 = vshrl.u32 1326507024, %v268
    %v284 = vor.u32 %v282, %v283
    %vm285 = vcmp.lt.s32.totalorder %v266, 1
    %vm286 = vcmp.lt.s32.totalorder %v266, 2
    %vm287 = vcmp.lt.s32.totalorder %v266, 3
    %vm288 = vcmp.lt.s32.totalorder %v266, 4
    %v289 = vsel %vm285, %v269, %v272
    %v290 = vsel %vm288, %v278, 2102212464
    %v291 = vsel %vm287, %v275, %v290
    %v292 = vsel %vm286, %v289, %v291
    %v293 = vsel %vm285, %v272, %v275
    %v294 = vsel %vm288, %v281, 920167782
    %v295 = vsel %vm287, %v278, %v294
    %v296 = vsel %vm286, %v293, %v295
    %v297 = vsel %vm285, %v275, %v278
    %v298 = vsel %vm288, %v284, 1326507024
    %v299 = vsel %vm287, %v281, %v298
    %v300 = vsel %vm286, %v297, %v299
    %v301 = vshll.u32 %v261, 8
    %v302 = vmul.u32.u64.compose %v301, %v300
    %v303 = vextract.low.u32 %v302
    %v304 = vextract.high.u32 %v302
    %v305 = vmul.u32.u64.compose %v301, %v296
    %v306 = vextract.low.u32 %v305
    %v307 = vextract.high.u32 %v305
    %v308 = vmul.u32 %v301, %v292
    %v309 = vadd.s32 %v304, %v306
    %vm310 = vc.u32 %v304, %v306
    %v311 = vadd.s32 %v307, 1
    %v312 = vsel %vm310, %v311, %v307
    %v313 = vadd.s32 %v308, %v312
    %v314 = vadd.s32 %v313, 536870912
    %v315 = vshrl.u32 %v314, 30
    %v316 = vshll.u32 %v315, 30
    %v317 = vsub.s32 %v313, %v316
    %vm318 = vcmp.lt.s32.totalorder %v317, 0
    %v319 = vsub.s32 0, %v317
    %v320 = vsel %vm318, %v319, %v317
    %v321 = vclz %v320
    %v322 = vsub.s32 %v321, 2
    %vm323 = vcmp.gt.s32.totalorder 0, %v322
    %v324 = vsel %vm323, 0, %v322
    %v325 = vsub.s32 32, %v324
    %v326 = vshll.u32 %v317, %v324
    %v327 = vshrl.u32 %v309, %v325
    %v328 = vor.u32 %v326, %v327
    %v329 = vsub.s32 4294967266, %v324
    %v330 = vadd.s32 %v329, 127
    %v331 = vshll.u32 %v330, 23
    %v332 = vor.u32 4788187, %v331
    %v333 = vand.u32 2147483647, %v332
    %v335 = vcvt.s32.f32 %v328
    %v336 = vmul.f32 %v335, %v333
    %v337 = vxor.u32 %v336, 2147483648
    %v338 = vsel %vm255, %v337, %v336
    %v339 = vsub.s32 4, %v315
    %v340 = vsel %vm255, %v339, %v315
    %v341 = vsel %vm254, %v252, %v338
    %v342 = vsel %vm254, 0, %v340
    %v343 = vcosq.f32.pop %v341
    %v344 = vsinq.f32.pop %v341
    %vm345 = vweird.f32 %v252
    %v346 = vadd.s32 %v342, 3
    %v347 = vand.u32 %v346, 3
    %vm348 = vcmp.lt.s32.totalorder %v347, 2
    %vm349 = vcmp.eq.s32.totalorder %v347, 0
    %v350 = vxor.u32 %v344, 2147483648
    %v351 = vsel %vm349, %v343, %v350
    %vm352 = vcmp.eq.s32.totalorder %v347, 2
    %v353 = vxor.u32 %v343, 2147483648
    %v354 = vsel %vm352, %v353, %v344
    %v355 = vsel %vm348, %v351, %v354
    %v356 = vsel %vm345, nan, %v355
    %v357 = vmul.f32 %v39, 12.566371
    %v358 = vand.u32 2147483647, %v357
    %vm359 = vcmp.le.f32.partialorder %v358, 0.7853982
    %vm360 = vcmp.lt.s32.totalorder %v357, 0
    %v361 = vand.u32 %v357, 2139095040
    %v362 = vshrl.u32 %v361, 23
    %v363 = vsub.s32 %v362, 127
    %v364 = vand.u32 2147483647, %v357
    %v365 = vand.u32 %v364, 8388607
    %v366 = vor.u32 %v365, 8388608
    %v367 = vsub.s32 0, %v366
    %v368 = vadd.s32 %v363, 1
    %vm369 = vcmp.gt.s32.totalorder %v368, 0
    %v370 = vsel %vm369, %v368, 0
    %v371 = vshrl.u32 %v370, 5
    %v372 = vand.u32 %v370, 31
    %v373 = vsub.s32 32, %v372
    %v374 = vshrl.u32 683565275, %v373
    %v375 = vshll.u32 683565275, %v372
    %v376 = vshrl.u32 2475754826, %v373
    %v377 = vor.u32 %v375, %v376
    %v378 = vshll.u32 2475754826, %v372
    %v379 = vshrl.u32 2131351028, %v373
    %v380 = vor.u32 %v378, %v379
    %v381 = vshll.u32 2131351028, %v372
    %v382 = vshrl.u32 2102212464, %v373
    %v383 = vor.u32 %v381, %v382
    %v384 = vshll.u32 2102212464, %v372
    %v385 = vshrl.u32 920167782, %v373
    %v386 = vor.u32 %v384, %v385
    %v387 = vshll.u32 920167782, %v372
    %v388 = vshrl.u32 1326507024, %v373
    %v389 = vor.u32 %v387, %v388
    %vm390 = vcmp.lt.s32.totalorder %v371, 1
    %vm391 = vcmp.lt.s32.totalorder %v371, 2
    %vm392 = vcmp.lt.s32.totalorder %v371, 3
    %vm393 = vcmp.lt.s32.totalorder %v371, 4
    %v394 = vsel %vm390, %v374, %v377
    %v395 = vsel %vm393, %v383, 2102212464
    %v396 = vsel %vm392, %v380, %v395
    %v397 = vsel %vm391, %v394, %v396
    %v398 = vsel %vm390, %v377, %v380
    %v399 = vsel %vm393, %v386, 920167782
    %v400 = vsel %vm392, %v383, %v399
    %v401 = vsel %vm391, %v398, %v400
    %v402 = vsel %vm390, %v380, %v383
    %v403 = vsel %vm393, %v389, 1326507024
    %v404 = vsel %vm392, %v386, %v403
    %v405 = vsel %vm391, %v402, %v404
    %v406 = vshll.u32 %v366, 8
    %v407 = vmul.u32.u64.compose %v406, %v405
    %v408 = vextract.low.u32 %v407
    %v409 = vextract.high.u32 %v407
    %v410 = vmul.u32.u64.compose %v406, %v401
    %v411 = vextract.low.u32 %v410
    %v412 = vextract.high.u32 %v410
    %v413 = vmul.u32 %v406, %v397
    %v414 = vadd.s32 %v409, %v411
    %vm415 = vc.u32 %v409, %v411
    %v416 = vadd.s32 %v412, 1
    %v417 = vsel %vm415, %v416, %v412
    %v418 = vadd.s32 %v413, %v417
    %v419 = vadd.s32 %v418, 536870912
    %v420 = vshrl.u32 %v419, 30
    %v421 = vshll.u32 %v420, 30
    %v422 = vsub.s32 %v418, %v421
    %vm423 = vcmp.lt.s32.totalorder %v422, 0
    %v424 = vsub.s32 0, %v422
    %v425 = vsel %vm423, %v424, %v422
    %v426 = vclz %v425
    %v427 = vsub.s32 %v426, 2
    %vm428 = vcmp.gt.s32.totalorder 0, %v427
    %v429 = vsel %vm428, 0, %v427
    %v430 = vsub.s32 32, %v429
    %v431 = vshll.u32 %v422, %v429
    %v432 = vshrl.u32 %v414, %v430
    %v433 = vor.u32 %v431, %v432
    %v434 = vsub.s32 4294967266, %v429
    %v435 = vadd.s32 %v434, 127
    %v436 = vshll.u32 %v435, 23
    %v437 = vor.u32 4788187, %v436
    %v438 = vand.u32 2147483647, %v437
    %v440 = vcvt.s32.f32 %v433
    %v441 = vmul.f32 %v440, %v438
    %v442 = vxor.u32 %v441, 2147483648
    %v443 = vsel %vm360, %v442, %v441
    %v444 = vsub.s32 4, %v420
    %v445 = vsel %vm360, %v444, %v420
    %v446 = vsel %vm359, %v357, %v443
    %v447 = vsel %vm359, 0, %v445
    %v448 = vcosq.f32.pop %v446
    %v449 = vsinq.f32.pop %v446
    %vm450 = vweird.f32 %v357
    %v451 = vadd.s32 %v447, 3
    %v452 = vand.u32 %v451, 3
    %vm453 = vcmp.lt.s32.totalorder %v452, 2
    %vm454 = vcmp.eq.s32.totalorder %v452, 0
    %v455 = vxor.u32 %v449, 2147483648
    %v456 = vsel %vm454, %v448, %v455
    %vm457 = vcmp.eq.s32.totalorder %v452, 2
    %v458 = vxor.u32 %v448, 2147483648
    %v459 = vsel %vm457, %v458, %v449
    %v460 = vsel %vm453, %v456, %v459
    %v461 = vsel %vm450, nan, %v460
    %v462 = vmul.f32 %v41, 6.2831855
    %v463 = vand.u32 2147483647, %v462
    %vm464 = vcmp.le.f32.partialorder %v463, 0.7853982
    %vm465 = vcmp.lt.s32.totalorder %v462, 0
    %v466 = vand.u32 %v462, 2139095040
    %v467 = vshrl.u32 %v466, 23
    %v468 = vsub.s32 %v467, 127
    %v469 = vand.u32 2147483647, %v462
    %v470 = vand.u32 %v469, 8388607
    %v471 = vor.u32 %v470, 8388608
    %v472 = vsub.s32 0, %v471
    %v473 = vadd.s32 %v468, 1
    %vm474 = vcmp.gt.s32.totalorder %v473, 0
    %v475 = vsel %vm474, %v473, 0
    %v476 = vshrl.u32 %v475, 5
    %v477 = vand.u32 %v475, 31
    %v478 = vsub.s32 32, %v477
    %v479 = vshrl.u32 683565275, %v478
    %v480 = vshll.u32 683565275, %v477
    %v481 = vshrl.u32 2475754826, %v478
    %v482 = vor.u32 %v480, %v481
    %v483 = vshll.u32 2475754826, %v477
    %v484 = vshrl.u32 2131351028, %v478
    %v485 = vor.u32 %v483, %v484
    %v486 = vshll.u32 2131351028, %v477
    %v487 = vshrl.u32 2102212464, %v478
    %v488 = vor.u32 %v486, %v487
    %v489 = vshll.u32 2102212464, %v477
    %v490 = vshrl.u32 920167782, %v478
    %v491 = vor.u32 %v489, %v490
    %v492 = vshll.u32 920167782, %v477
    %v493 = vshrl.u32 1326507024, %v478
    %v494 = vor.u32 %v492, %v493
    %vm495 = vcmp.lt.s32.totalorder %v476, 1
    %vm496 = vcmp.lt.s32.totalorder %v476, 2
    %vm497 = vcmp.lt.s32.totalorder %v476, 3
    %vm498 = vcmp.lt.s32.totalorder %v476, 4
    %v499 = vsel %vm495, %v479, %v482
    %v500 = vsel %vm498, %v488, 2102212464
    %v501 = vsel %vm497, %v485, %v500
    %v502 = vsel %vm496, %v499, %v501
    %v503 = vsel %vm495, %v482, %v485
    %v504 = vsel %vm498, %v491, 920167782
    %v505 = vsel %vm497, %v488, %v504
    %v506 = vsel %vm496, %v503, %v505
    %v507 = vsel %vm495, %v485, %v488
    %v508 = vsel %vm498, %v494, 1326507024
    %v509 = vsel %vm497, %v491, %v508
    %v510 = vsel %vm496, %v507, %v509
    %v511 = vshll.u32 %v471, 8
    %v512 = vmul.u32.u64.compose %v511, %v510
    %v513 = vextract.low.u32 %v512
    %v514 = vextract.high.u32 %v512
    %v515 = vmul.u32.u64.compose %v511, %v506
    %v516 = vextract.low.u32 %v515
    %v517 = vextract.high.u32 %v515
    %v518 = vmul.u32 %v511, %v502
    %v519 = vadd.s32 %v514, %v516
    %vm520 = vc.u32 %v514, %v516
    %v521 = vadd.s32 %v517, 1
    %v522 = vsel %vm520, %v521, %v517
    %v523 = vadd.s32 %v518, %v522
    %v524 = vadd.s32 %v523, 536870912
    %v525 = vshrl.u32 %v524, 30
    %v526 = vshll.u32 %v525, 30
    %v527 = vsub.s32 %v523, %v526
    %vm528 = vcmp.lt.s32.totalorder %v527, 0
    %v529 = vsub.s32 0, %v527
    %v530 = vsel %vm528, %v529, %v527
    %v531 = vclz %v530
    %v532 = vsub.s32 %v531, 2
    %vm533 = vcmp.gt.s32.totalorder 0, %v532
    %v534 = vsel %vm533, 0, %v532
    %v535 = vsub.s32 32, %v534
    %v536 = vshll.u32 %v527, %v534
    %v537 = vshrl.u32 %v519, %v535
    %v538 = vor.u32 %v536, %v537
    %v539 = vsub.s32 4294967266, %v534
    %v540 = vadd.s32 %v539, 127
    %v541 = vshll.u32 %v540, 23
    %v542 = vor.u32 4788187, %v541
    %v543 = vand.u32 2147483647, %v542
    %v545 = vcvt.s32.f32 %v538
    %v546 = vmul.f32 %v545, %v543
    %v547 = vxor.u32 %v546, 2147483648
    %v548 = vsel %vm465, %v547, %v546
    %v549 = vsub.s32 4, %v525
    %v550 = vsel %vm465, %v549, %v525
    %v551 = vsel %vm464, %v462, %v548
    %v552 = vsel %vm464, 0, %v550
    %v553 = vcosq.f32.pop %v551
    %v554 = vsinq.f32.pop %v551
    %vm555 = vweird.f32 %v462
    %v556 = vadd.s32 %v552, 3
    %v557 = vand.u32 %v556, 3
    %vm558 = vcmp.lt.s32.totalorder %v557, 2
    %vm559 = vcmp.eq.s32.totalorder %v557, 0
    %v560 = vxor.u32 %v554, 2147483648
    %v561 = vsel %vm559, %v553, %v560
    %vm562 = vcmp.eq.s32.totalorder %v557, 2
    %v563 = vxor.u32 %v553, 2147483648
    %v564 = vsel %vm562, %v563, %v554
    %v565 = vsel %vm558, %v561, %v564
    %v566 = vsel %vm555, nan, %v565
    %v567 = vmul.f32 %v41, 12.566371
    %v568 = vand.u32 2147483647, %v567
    %vm569 = vcmp.le.f32.partialorder %v568, 0.7853982
    %vm570 = vcmp.lt.s32.totalorder %v567, 0
    %v571 = vand.u32 %v567, 2139095040
    %v572 = vshrl.u32 %v571, 23
    %v573 = vsub.s32 %v572, 127
    %v574 = vand.u32 2147483647, %v567
    %v575 = vand.u32 %v574, 8388607
    %v576 = vor.u32 %v575, 8388608
    %v577 = vsub.s32 0, %v576
    %v578 = vadd.s32 %v573, 1
    %vm579 = vcmp.gt.s32.totalorder %v578, 0
    %v580 = vsel %vm579, %v578, 0
    %v581 = vshrl.u32 %v580, 5
    %v582 = vand.u32 %v580, 31
    %v583 = vsub.s32 32, %v582
    %v584 = vshrl.u32 683565275, %v583
    %v585 = vshll.u32 683565275, %v582
    %v586 = vshrl.u32 2475754826, %v583
    %v587 = vor.u32 %v585, %v586
    %v588 = vshll.u32 2475754826, %v582
    %v589 = vshrl.u32 2131351028, %v583
    %v590 = vor.u32 %v588, %v589
    %v591 = vshll.u32 2131351028, %v582
    %v592 = vshrl.u32 2102212464, %v583
    %v593 = vor.u32 %v591, %v592
    %v594 = vshll.u32 2102212464, %v582
    %v595 = vshrl.u32 920167782, %v583
    %v596 = vor.u32 %v594, %v595
    %v597 = vshll.u32 920167782, %v582
    %v598 = vshrl.u32 1326507024, %v583
    %v599 = vor.u32 %v597, %v598
    %vm600 = vcmp.lt.s32.totalorder %v581, 1
    %vm601 = vcmp.lt.s32.totalorder %v581, 2
    %vm602 = vcmp.lt.s32.totalorder %v581, 3
    %vm603 = vcmp.lt.s32.totalorder %v581, 4
    %v604 = vsel %vm600, %v584, %v587
    %v605 = vsel %vm603, %v593, 2102212464
    %v606 = vsel %vm602, %v590, %v605
    %v607 = vsel %vm601, %v604, %v606
    %v608 = vsel %vm600, %v587, %v590
    %v609 = vsel %vm603, %v596, 920167782
    %v610 = vsel %vm602, %v593, %v609
    %v611 = vsel %vm601, %v608, %v610
    %v612 = vsel %vm600, %v590, %v593
    %v613 = vsel %vm603, %v599, 1326507024
    %v614 = vsel %vm602, %v596, %v613
    %v615 = vsel %vm601, %v612, %v614
    %v616 = vshll.u32 %v576, 8
    %v617 = vmul.u32.u64.compose %v616, %v615
    %v618 = vextract.low.u32 %v617
    %v619 = vextract.high.u32 %v617
    %v620 = vmul.u32.u64.compose %v616, %v611
    %v621 = vextract.low.u32 %v620
    %v622 = vextract.high.u32 %v620
    %v623 = vmul.u32 %v616, %v607
    %v624 = vadd.s32 %v619, %v621
    %vm625 = vc.u32 %v619, %v621
    %v626 = vadd.s32 %v622, 1
    %v627 = vsel %vm625, %v626, %v622
    %v628 = vadd.s32 %v623, %v627
    %v629 = vadd.s32 %v628, 536870912
    %v630 = vshrl.u32 %v629, 30
    %v631 = vshll.u32 %v630, 30
    %v632 = vsub.s32 %v628, %v631
    %vm633 = vcmp.lt.s32.totalorder %v632, 0
    %v634 = vsub.s32 0, %v632
    %v635 = vsel %vm633, %v634, %v632
    %v636 = vclz %v635
    %v637 = vsub.s32 %v636, 2
    %vm638 = vcmp.gt.s32.totalorder 0, %v637
    %v639 = vsel %vm638, 0, %v637
    %v640 = vsub.s32 32, %v639
    %v641 = vshll.u32 %v632, %v639
    %v642 = vshrl.u32 %v624, %v640
    %v643 = vor.u32 %v641, %v642
    %v644 = vsub.s32 4294967266, %v639
    %v645 = vadd.s32 %v644, 127
    %v646 = vshll.u32 %v645, 23
    %v647 = vor.u32 4788187, %v646
    %v648 = vand.u32 2147483647, %v647
    %v650 = vcvt.s32.f32 %v643
    %v651 = vmul.f32 %v650, %v648
    %v652 = vxor.u32 %v651, 2147483648
    %v653 = vsel %vm570, %v652, %v651
    %v654 = vsub.s32 4, %v630
    %v655 = vsel %vm570, %v654, %v630
    %v656 = vsel %vm569, %v567, %v653
    %v657 = vsel %vm569, 0, %v655
    %v658 = vcosq.f32.pop %v656
    %v659 = vsinq.f32.pop %v656
    %vm660 = vweird.f32 %v567
    %v661 = vadd.s32 %v657, 3
    %v662 = vand.u32 %v661, 3
    %vm663 = vcmp.lt.s32.totalorder %v662, 2
    %vm664 = vcmp.eq.s32.totalorder %v662, 0
    %v665 = vxor.u32 %v659, 2147483648
    %v666 = vsel %vm664, %v658, %v665
    %vm667 = vcmp.eq.s32.totalorder %v662, 2
    %v668 = vxor.u32 %v658, 2147483648
    %v669 = vsel %vm667, %v668, %v659
    %v670 = vsel %vm663, %v666, %v669
    %v671 = vsel %vm660, nan, %v670
    %s672 = sld [smem:[#allocation2 + $0xd]]
    %v673 = vstv %s672
    %v674 = vmul.f32 %v673, %v566
    %s675 = sld [smem:[#allocation2 + $0xe]]
    %v676 = vstv %s675
    %v677 = vmul.f32 %v676, %v671
    %v678 = vadd.f32 %v674, %v677
    %v679 = vmul.f32 %v356, %v678
    %v680 = vadd.f32 %v679, 0.0
    %s681 = sld [smem:[#allocation2 + $0x10]]
    %v682 = vstv %s681
    %v683 = vmul.f32 %v682, %v566
    %s684 = sld [smem:[#allocation2 + $0x11]]
    %v685 = vstv %s684
    %v686 = vmul.f32 %v685, %v671
    %v687 = vadd.f32 %v683, %v686
    %v688 = vmul.f32 %v461, %v687
    %v689 = vadd.f32 %v680, %v688
    %v690 = vmul.f32 %v146, %v689
    %v691 = vadd.f32 %v690, 0.0
    %s692 = sld [smem:[#allocation2 + $0x16]]
    %v693 = vstv %s692
    %v694 = vmul.f32 %v693, %v566
    %s695 = sld [smem:[#allocation2 + $0x17]]
    %v696 = vstv %s695
    %v697 = vmul.f32 %v696, %v671
    %v698 = vadd.f32 %v694, %v697
    %v699 = vmul.f32 %v356, %v698
    %v700 = vadd.f32 %v699, 0.0
    %s701 = sld [smem:[#allocation2 + $0x19]]
    %v702 = vstv %s701
    %v703 = vmul.f32 %v702, %v566
    %s704 = sld [smem:[#allocation2 + $0x1a]]
    %v705 = vstv %s704
    %v706 = vmul.f32 %v705, %v671
    %v707 = vadd.f32 %v703, %v706
    %v708 = vmul.f32 %v461, %v707
    %v709 = vadd.f32 %v700, %v708
    %v710 = vmul.f32 %v251, %v709
    %v711 = vadd.f32 %v691, %v710
    %712 = vst [vmem:[#allocation7] sm:$0xff] %v711
    // Predicated region
    $region18: #{tpu_custom_call.1} parent=1 // pred_check
      _
    $region19: #{tpu_custom_call.1} parent=1 // pred_check_branch
      %714 = sbr.rel (0) target = $region21
    $region20: #{tpu_custom_call.1} parent=1 // pred_region
      %s716 = ssub.s32 128, 128
      %717 = vsyncadd [#allocation4], %s716
      %s719 = sshll.u32 [#allocation7], 4
      %s720 = int_to_ptr.vmem [resolvable:$true] %s719
      %722 = dma.vmem_to_hbm [thread:$0]  %s720, 128, %s2, [#allocation4]
    $region21: #{tpu_custom_call.1} parent=1 // pred_fallthru
      _
    // Predicated region
    $region22: #{tpu_custom_call.1} parent=1 // pred_check
      _
    $region23: #{tpu_custom_call.1} parent=1 // pred_check_branch
      %724 = sbr.rel (0) target = $region25
    $region24: #{tpu_custom_call.1} parent=1 // pred_region
      %725 = dma.done [#allocation4], 128
    $region25: #{tpu_custom_call.1} parent=1 // pred_fallthru
      _
    %726 = vsyncpa [#allocation3], 1
    %727 = vsyncpa [#allocation4], 1
    %728 = vsyncpa [#allocation5], 1

</llo_original>
